<compile_context>
chip_gen: v5e
topology: v5e:2x2
jax: 0.10.0
libtpu: 0.0.40
codegen_flags: <defaults>
</compile_context>

<pallas_src>
import functools

import jax
import jax.numpy as jnp
from jax.experimental import pallas as pl
from jax.experimental.pallas import tpu as pltpu


def _round_up(x, m):
    return ((x + m - 1) // m) * m


def generator_kernel(z_ref, w1_ref, b1_ref, w2_ref, b2_ref, out_ref, *, ep_dtype):
    # fc1: cast the activation tile to bf16 in-kernel (full-rate MXU), f32 acc.
    z_bf = z_ref[...].astype(jnp.bfloat16)
    h = jnp.dot(z_bf, w1_ref[...], preferred_element_type=jnp.float32)
    h = jnp.maximum(h + b1_ref[...], 0.0)                 # (tb, H) + (1, H)
    # fc2: bf16 MXU again, f32 accumulation.
    logits = jnp.dot(h.astype(jnp.bfloat16), w2_ref[...],
                     preferred_element_type=jnp.float32)
    s = logits + b2_ref[...]                              # (tb, X) + (1, X)
    # Sigmoid (EUP) in bf16 on v6e/v7x, f32 on v5e; store in out dtype.
    out_ref[...] = jax.nn.sigmoid(s.astype(ep_dtype)).astype(out_ref.dtype)


def generator_forward(z, w1, b1, w2, b2, *, tb=None, out_dtype=jnp.bfloat16,
                      min_kernel_batch=256, epilogue_dtype=None):
    """Generator forward: sigmoid(relu(z @ w1 + b1) @ w2 + b2).

    z: (B, Z); w1: (Z, H); b1: (H,); w2: (H, X); b2: (X,) -> (B, X).
    Weights are stored (in, out), i.e. pre-transposed relative to nn.Linear.
    """
    B, Z = z.shape
    H = w1.shape[1]
    X = w2.shape[1]

    # Tiny-batch fallback: pallas_call launch overhead dominates; let XLA fuse.
    if B < min_kernel_batch:
        h = jnp.maximum(jnp.dot(z, w1) + b1, 0.0)
        return jax.nn.sigmoid(jnp.dot(h, w2) + b2).astype(out_dtype)

    # Epilogue precision: bf16 where the VPU/EUP support it (v6e/v7x), else f32.
    if epilogue_dtype is None:
        kind = jax.devices()[0].device_kind.lower()
        epilogue_dtype = jnp.float32 if "v5" in kind else jnp.bfloat16

    # Batch tile: one big tile for small/medium B (single-TC v5e/v6e, and
    # latency-bound small-B v7x); only split >=2 ways when B is large enough
    # for megacore sharding to pay. Cap 1024: per-step VMEM stays tiny.
    if tb is None:
        if B >= 512:
            tb = min(1024, _round_up(pl.cdiv(B, 2), 16))
        else:
            tb = _round_up(B, 16)
    tb = max(16, _round_up(tb, 16))        # bf16 sublane packing: multiple of 16

    Bp = _round_up(B, tb)
    if Bp != B:
        z = jnp.pad(z, ((0, Bp - B), (0, 0)))

    # Weights/biases: weight casts are tiny; z stays f32 (cast in-kernel).
    w1_bf = w1.astype(jnp.bfloat16)
    w2_bf = w2.astype(jnp.bfloat16)
    b1_2d = b1.reshape(1, H).astype(jnp.float32)
    b2_2d = b2.reshape(1, X).astype(jnp.float32)

    out_bytes = Bp * X * jnp.dtype(out_dtype).itemsize
    in_bytes = (Bp * Z * z.dtype.itemsize
                + w1_bf.size * 2 + w2_bf.size * 2 + (H + X) * 4)
    cost = pl.CostEstimate(
        flops=2 * Bp * (Z * H + H * X),
        transcendentals=Bp * X,                 # exp in sigmoid
        bytes_accessed=in_bytes + out_bytes,
    )

    kernel = functools.partial(generator_kernel, ep_dtype=epilogue_dtype)

    out = pl.pallas_call(
        kernel,
        out_shape=jax.ShapeDtypeStruct((Bp, X), out_dtype),
        grid_spec=pltpu.PrefetchScalarGridSpec(
            num_scalar_prefetch=0,
            grid=(Bp // tb,),
            in_specs=[
                pl.BlockSpec((tb, Z), lambda i: (i, 0)),   # z tile (f32)
                pl.BlockSpec((Z, H), lambda i: (0, 0)),    # W1 (invariant)
                pl.BlockSpec((1, H), lambda i: (0, 0)),    # b1 (invariant)
                pl.BlockSpec((H, X), lambda i: (0, 0)),    # W2 (invariant)
                pl.BlockSpec((1, X), lambda i: (0, 0)),    # b2 (invariant)
            ],
            out_specs=pl.BlockSpec((tb, X), lambda i: (i, 0)),
        ),
        compiler_params=pltpu.CompilerParams(
            dimension_semantics=("parallel",),
        ),
        cost_estimate=cost,
    )(z, w1_bf, b1_2d, w2_bf, b2_2d)

    return out[:B] if Bp != B else out


def xavier_normal(key, fan_in, fan_out):
    # matches torch.nn.init.xavier_normal_: std = sqrt(2 / (fan_in + fan_out))
    std = jnp.sqrt(2.0 / (fan_in + fan_out))
    return jax.random.normal(key, (fan_in, fan_out), dtype=jnp.float32) * std


if __name__ == "__main__":
    # Shapes consistent with the module: z_dim=32, h_dim=128, x_dim=256.
    # B=512 takes the kernel path (>= min_kernel_batch) and, with tb=256,
    # gives a 2-step 'parallel' grid that can shard across v7x's two cores.
    B, Z_DIM, H_DIM, X_DIM = 512, 32, 128, 256

    key = jax.random.PRNGKey(0)
    kz, k1, k2 = jax.random.split(key, 3)

    z = jax.random.normal(kz, (B, Z_DIM), dtype=jnp.float32)

    # Parameters (xavier-normal weights, zero biases), stored as (in, out).
    w1 = xavier_normal(k1, Z_DIM, H_DIM)
    b1 = jnp.zeros((H_DIM,), dtype=jnp.float32)
    w2 = xavier_normal(k2, H_DIM, X_DIM)
    b2 = jnp.zeros((X_DIM,), dtype=jnp.float32)

    out = generator_forward(z, w1, b1, w2, b2)
    out = jax.block_until_ready(out)

    # Reference: pure f32 JAX (module semantics). bf16 MXU inputs + bf16
    # output/epilogue cost ~1e-3-level deviations, so use a modest tolerance.
    ref_f32 = jax.nn.sigmoid(jnp.maximum(z @ w1 + b1, 0.0) @ w2 + b2)
    out_f32 = out.astype(jnp.float32)

    assert out.shape == (B, X_DIM)
    assert out.dtype == jnp.bfloat16
    assert bool(jnp.all(jnp.isfinite(out_f32)))
    assert bool(jnp.all((out_f32 >= 0.0) & (out_f32 <= 1.0)))
    assert bool(jnp.allclose(out_f32, ref_f32, atol=2e-2, rtol=2e-2))

    print("KERNEL_OK")
</pallas_src>

<mosaic_0001>
module attributes {stable_mosaic.version = 11 : i64} {
  func.func @generator_kernel(%arg0: i32, %arg1: memref<256x32xf32, #tpu.memory_space<vmem>>, %arg2: memref<32x128xbf16, #tpu.memory_space<vmem>>, %arg3: memref<1x128xf32, #tpu.memory_space<vmem>>, %arg4: memref<128x256xbf16, #tpu.memory_space<vmem>>, %arg5: memref<1x256xf32, #tpu.memory_space<vmem>>, %arg6: memref<256x256xbf16, #tpu.memory_space<vmem>>) attributes {dimension_semantics = [#tpu.dimension_semantics<parallel>], iteration_bounds = array<i64: 2>, scalar_prefetch = 0 : i64, scratch_operands = 0 : i64, tpu.core_type = #tpu.core_type<tc>, window_params = [{transform_indices = @transform_0, window_bounds = array<i64: 256, 32>}, {pipeline_mode = #tpu.pipeline_mode<synchronous>, transform_indices = @transform_1, window_bounds = array<i64: 32, 128>}, {pipeline_mode = #tpu.pipeline_mode<synchronous>, transform_indices = @transform_2, window_bounds = array<i64: 1, 128>}, {pipeline_mode = #tpu.pipeline_mode<synchronous>, transform_indices = @transform_3, window_bounds = array<i64: 128, 256>}, {pipeline_mode = #tpu.pipeline_mode<synchronous>, transform_indices = @transform_4, window_bounds = array<i64: 1, 256>}, {transform_indices = @transform_5, window_bounds = array<i64: 256, 256>}]} {
    %c0 = arith.constant 0 : index
    %c0_0 = arith.constant 0 : index
    %0 = vector.load %arg1[%c0, %c0_0] : memref<256x32xf32, #tpu.memory_space<vmem>>, vector<256x32xf32>
    %1 = arith.truncf %0 : vector<256x32xf32> to vector<256x32xbf16>
    %c0_1 = arith.constant 0 : index
    %c0_2 = arith.constant 0 : index
    %2 = vector.load %arg2[%c0_1, %c0_2] : memref<32x128xbf16, #tpu.memory_space<vmem>>, vector<32x128xbf16>
    %cst = arith.constant dense<0.000000e+00> : vector<256x128xf32>
    %3 = tpu.matmul %1, %2, %cst {dimension_numbers = #tpu.dot_dimension_numbers<[1], [0], [0], [1], [0, 0, 1, 1], [], []>} : vector<256x32xbf16>, vector<32x128xbf16>, vector<256x128xf32> -> vector<256x128xf32>
    %c0_3 = arith.constant 0 : index
    %c0_4 = arith.constant 0 : index
    %4 = vector.load %arg3[%c0_3, %c0_4] : memref<1x128xf32, #tpu.memory_space<vmem>>, vector<1x128xf32>
    %5 = vector.broadcast %4 : vector<1x128xf32> to vector<256x128xf32>
    %6 = arith.addf %3, %5 : vector<256x128xf32>
    %cst_5 = arith.constant 0.000000e+00 : f32
    %7 = vector.broadcast %cst_5 : f32 to vector<256x128xf32>
    %8 = arith.maximumf %6, %7 : vector<256x128xf32>
    %9 = arith.truncf %8 : vector<256x128xf32> to vector<256x128xbf16>
    %c0_6 = arith.constant 0 : index
    %c0_7 = arith.constant 0 : index
    %10 = vector.load %arg4[%c0_6, %c0_7] : memref<128x256xbf16, #tpu.memory_space<vmem>>, vector<128x256xbf16>
    %cst_8 = arith.constant dense<0.000000e+00> : vector<256x256xf32>
    %11 = tpu.matmul %9, %10, %cst_8 {dimension_numbers = #tpu.dot_dimension_numbers<[1], [0], [0], [1], [0, 0, 1, 1], [], []>} : vector<256x128xbf16>, vector<128x256xbf16>, vector<256x256xf32> -> vector<256x256xf32>
    %c0_9 = arith.constant 0 : index
    %c0_10 = arith.constant 0 : index
    %12 = vector.load %arg5[%c0_9, %c0_10] : memref<1x256xf32, #tpu.memory_space<vmem>>, vector<1x256xf32>
    %13 = vector.broadcast %12 : vector<1x256xf32> to vector<256x256xf32>
    %14 = arith.addf %11, %13 : vector<256x256xf32>
    %15 = arith.truncf %14 : vector<256x256xf32> to vector<256x256xbf16>
    %16 = arith.negf %15 : vector<256x256xbf16>
    %17 = math.exp %16 : vector<256x256xbf16>
    %cst_11 = arith.constant 1.000000e+00 : bf16
    %18 = vector.broadcast %cst_11 : bf16 to vector<256x256xbf16>
    %19 = arith.addf %18, %17 : vector<256x256xbf16>
    %20 = arith.divf %18, %19 : vector<256x256xbf16>
    %c0_12 = arith.constant 0 : index
    %c0_13 = arith.constant 0 : index
    %21 = vector.load %arg6[%c0_12, %c0_13] : memref<256x256xbf16, #tpu.memory_space<vmem>>, vector<256x256xbf16>
    tpu.vector_store %arg6[%c0_12, %c0_13], %20 {strides = array<i32>} : memref<256x256xbf16, #tpu.memory_space<vmem>>, vector<256x256xbf16>,
    return
  }
  func.func @transform_0(%arg0: i32) -> (i32, i32) {
    %c0_i32 = arith.constant 0 : i32
    %c0_i32_0 = arith.constant 0 : i32
    return %arg0, %c0_i32 : i32, i32
  }
  func.func @transform_1(%arg0: i32) -> (i32, i32) {
    %c0_i32 = arith.constant 0 : i32
    %c0_i32_0 = arith.constant 0 : i32
    %c0_i32_1 = arith.constant 0 : i32
    return %c0_i32, %c0_i32_0 : i32, i32
  }
  func.func @transform_2(%arg0: i32) -> (i32, i32) {
    %c0_i32 = arith.constant 0 : i32
    %c0_i32_0 = arith.constant 0 : i32
    %c0_i32_1 = arith.constant 0 : i32
    return %c0_i32, %c0_i32_0 : i32, i32
  }
  func.func @transform_3(%arg0: i32) -> (i32, i32) {
    %c0_i32 = arith.constant 0 : i32
    %c0_i32_0 = arith.constant 0 : i32
    %c0_i32_1 = arith.constant 0 : i32
    return %c0_i32, %c0_i32_0 : i32, i32
  }
  func.func @transform_4(%arg0: i32) -> (i32, i32) {
    %c0_i32 = arith.constant 0 : i32
    %c0_i32_0 = arith.constant 0 : i32
    %c0_i32_1 = arith.constant 0 : i32
    return %c0_i32, %c0_i32_0 : i32, i32
  }
  func.func @transform_5(%arg0: i32) -> (i32, i32) {
    %c0_i32 = arith.constant 0 : i32
    %c0_i32_0 = arith.constant 0 : i32
    return %arg0, %c0_i32 : i32, i32
  }
}

</mosaic_0001>

<llo_original>
// kernel: tpu_custom_call.1
$region0: #{tpu_custom_call.1}
  #allocation0 [shape = 'u32[]', space=smem, size = 0x4, offset = 0x4, fixed_abs, tag = 'smem constant byte address 0x4 - core index']
  #allocation1 [shape = 'u32[72,128]{1,0:T(1,128)}', space=vmem, size = 0x9000, scoped, tag = 'internal scratch']
  %s0 = inlined_call_operand.vmem [shape: f32[512,32], index: 0, kind: input, shape index: {}]
  %s1 = inlined_call_operand.vmem [shape: bf16[32,128], index: 1, kind: input, shape index: {}]
  %s2 = inlined_call_operand.vmem [shape: f32[1,128], index: 2, kind: input, shape index: {}]
  %s3 = inlined_call_operand.vmem [shape: bf16[128,256], index: 3, kind: input, shape index: {}]
  %s4 = inlined_call_operand.vmem [shape: f32[1,256], index: 4, kind: input, shape index: {}]
  %s5 = inlined_call_operand.hbm [shape: bf16[512,256], index: 5, kind: output, shape index: {}]
  %s6 = sld [smem:[#allocation0]]
  $region53: #{tpu_custom_call.1} parent=0
    _
  %s8 = ssub.s32 1, %s6
  %s9 = scalar_select 0, %s8, %s6
  $region1: #{tpu_custom_call.1} parent=0
    #allocation2 [shape = 'u8[262144]{0}', space=vmem, size = 0x40000, scoped, tag = 'output window, operand 0']
    #allocation3 [shape = 's32[2]{0}', space=sflag, size = 0x8, scoped, tag = 'scoped memory for tpu_custom_call.1']
    %10 = vsyncpa [#allocation3], 0
    %s11 = scalar_lea.sflag [#allocation3], 1
    %12 = vsyncpa %s11, 0
    loop: start=0, step=1, limit=4
    $region2: #{tpu_custom_call.1} parent=1 // loop_pre_header
      _
    $region3: #{tpu_custom_call.1} parent=1 // loop_header
      %s14 = sphi 0, %s18
      %p15 = scmp.ge.s32.totalorder %s14, 4
      %s24 = sphi 0, %s26
      %s27 = sphi 0, %s24
      %s28 = sphi 0, %s27
      %s44 = sphi 0, %s28
      %s48 = sphi 0, %s48
      %s50 = sphi 0, %s48
      %s51 = sphi 0, %s50
      %s65 = sphi 0, %s51
      %s69 = sphi 0, %s69
      %s71 = sphi 0, %s69
      %s72 = sphi 0, %s71
      %s86 = sphi 0, %s72
      %s90 = sphi 0, %s90
      %s92 = sphi 0, %s90
      %s93 = sphi 0, %s92
      %s107 = sphi 0, %s93
      %s111 = sphi 0, %s111
      %s113 = sphi 0, %s111
      %s114 = sphi 0, %s113
      %s128 = sphi 0, %s114
      %s134 = sphi 0, %s136
      %s137 = sphi 0, %s134
      %s138 = sphi 0, %s137
      %s154 = sphi 0, %s138
    $region4: #{tpu_custom_call.1} parent=1 // loop_header_branch
      %17 = sbr.rel (%p15) target = $region8
    $region5: #{tpu_custom_call.1} parent=1 // loop_body
      %s19 = ssub.s32 %s14, 1
      %s20 = ssub.s32 %s14, 2
      %s21 = sadd.s32 %s14, 1
      %s22 = ssub.s32 %s14, %s21
      %p23 = scmp.eq.s32.totalorder %s22, 0
      %s25 = sadd.s32 %s24, 1
      %s26 = scalar_select %p23, %s24, %s25
      %p29 = pneg %p23
      %p30 = scmp.eq.s32.totalorder %s14, 1
      %p31 = por %p29, %p30
      %p32 = scmp.ne.s32.totalorder %s24, %s27
      %p33 = scmp.eq.s32.totalorder %s14, 0
      %p34 = por %p32, %p33
      %p35 = scmp.ne.s32.totalorder %s24, %s27
      %p36 = scmp.eq.s32.totalorder %s19, 1
      %p37 = por %p35, %p36
      %p38 = scmp.ne.s32.totalorder %s27, %s28
      %p39 = scmp.eq.s32.totalorder %s19, 0
      %p40 = por %p38, %p39
      %p41 = scmp.ne.s32.totalorder %s27, %s28
      %p42 = scmp.eq.s32.totalorder %s20, 1
      %p43 = por %p41, %p42
      %p45 = scmp.ne.s32.totalorder %s28, %s44
      %p46 = scmp.eq.s32.totalorder %s20, 0
      %p47 = por %p45, %p46
      %s49 = sadd.s32 %s48, 1
      %p52 = scmp.eq.s32.totalorder %s14, 1
      %p53 = scmp.ne.s32.totalorder %s48, %s50
      %p54 = scmp.eq.s32.totalorder %s14, 0
      %p55 = por %p53, %p54
      %p56 = scmp.ne.s32.totalorder %s48, %s50
      %p57 = scmp.eq.s32.totalorder %s19, 1
      %p58 = por %p56, %p57
      %p59 = scmp.ne.s32.totalorder %s50, %s51
      %p60 = scmp.eq.s32.totalorder %s19, 0
      %p61 = por %p59, %p60
      %p62 = scmp.ne.s32.totalorder %s50, %s51
      %p63 = scmp.eq.s32.totalorder %s20, 1
      %p64 = por %p62, %p63
      %p66 = scmp.ne.s32.totalorder %s51, %s65
      %p67 = scmp.eq.s32.totalorder %s20, 0
      %p68 = por %p66, %p67
      %s70 = sadd.s32 %s69, 1
      %p73 = scmp.eq.s32.totalorder %s14, 1
      %p74 = scmp.ne.s32.totalorder %s69, %s71
      %p75 = scmp.eq.s32.totalorder %s14, 0
      %p76 = por %p74, %p75
      %p77 = scmp.ne.s32.totalorder %s69, %s71
      %p78 = scmp.eq.s32.totalorder %s19, 1
      %p79 = por %p77, %p78
      %p80 = scmp.ne.s32.totalorder %s71, %s72
      %p81 = scmp.eq.s32.totalorder %s19, 0
      %p82 = por %p80, %p81
      %p83 = scmp.ne.s32.totalorder %s71, %s72
      %p84 = scmp.eq.s32.totalorder %s20, 1
      %p85 = por %p83, %p84
      %p87 = scmp.ne.s32.totalorder %s72, %s86
      %p88 = scmp.eq.s32.totalorder %s20, 0
      %p89 = por %p87, %p88
      %s91 = sadd.s32 %s90, 1
      %p94 = scmp.eq.s32.totalorder %s14, 1
      %p95 = scmp.ne.s32.totalorder %s90, %s92
      %p96 = scmp.eq.s32.totalorder %s14, 0
      %p97 = por %p95, %p96
      %p98 = scmp.ne.s32.totalorder %s90, %s92
      %p99 = scmp.eq.s32.totalorder %s19, 1
      %p100 = por %p98, %p99
      %p101 = scmp.ne.s32.totalorder %s92, %s93
      %p102 = scmp.eq.s32.totalorder %s19, 0
      %p103 = por %p101, %p102
      %p104 = scmp.ne.s32.totalorder %s92, %s93
      %p105 = scmp.eq.s32.totalorder %s20, 1
      %p106 = por %p104, %p105
      %p108 = scmp.ne.s32.totalorder %s93, %s107
      %p109 = scmp.eq.s32.totalorder %s20, 0
      %p110 = por %p108, %p109
      %s112 = sadd.s32 %s111, 1
      %p115 = scmp.eq.s32.totalorder %s14, 1
      %p116 = scmp.ne.s32.totalorder %s111, %s113
      %p117 = scmp.eq.s32.totalorder %s14, 0
      %p118 = por %p116, %p117
      %p119 = scmp.ne.s32.totalorder %s111, %s113
      %p120 = scmp.eq.s32.totalorder %s19, 1
      %p121 = por %p119, %p120
      %p122 = scmp.ne.s32.totalorder %s113, %s114
      %p123 = scmp.eq.s32.totalorder %s19, 0
      %p124 = por %p122, %p123
      %p125 = scmp.ne.s32.totalorder %s113, %s114
      %p126 = scmp.eq.s32.totalorder %s20, 1
      %p127 = por %p125, %p126
      %p129 = scmp.ne.s32.totalorder %s114, %s128
      %p130 = scmp.eq.s32.totalorder %s20, 0
      %p131 = por %p129, %p130
      %s132 = ssub.s32 %s14, %s21
      %p133 = scmp.eq.s32.totalorder %s132, 0
      %s135 = sadd.s32 %s134, 1
      %s136 = scalar_select %p133, %s134, %s135
      %p139 = pneg %p133
      %p140 = scmp.eq.s32.totalorder %s14, 1
      %p141 = por %p139, %p140
      %p142 = scmp.ne.s32.totalorder %s134, %s137
      %p143 = scmp.eq.s32.totalorder %s14, 0
      %p144 = por %p142, %p143
      %p145 = scmp.ne.s32.totalorder %s134, %s137
      %p146 = scmp.eq.s32.totalorder %s19, 1
      %p147 = por %p145, %p146
      %p148 = scmp.ne.s32.totalorder %s137, %s138
      %p149 = scmp.eq.s32.totalorder %s19, 0
      %p150 = por %p148, %p149
      %p151 = scmp.ne.s32.totalorder %s137, %s138
      %p152 = scmp.eq.s32.totalorder %s20, 1
      %p153 = por %p151, %p152
      %p155 = scmp.ne.s32.totalorder %s138, %s154
      %p156 = scmp.eq.s32.totalorder %s20, 0
      %p157 = por %p155, %p156
      %p158 = scmp.le.s32.totalorder 1, %s14
      %p159 = scmp.lt.s32.totalorder %s14, 3
      %p160 = pnand %p158, %p159
      %p161 = pneg %p160
      // Predicated region
      $region9: #{tpu_custom_call.1} parent=5 // pred_check
        _
      $region10: #{tpu_custom_call.1} parent=5 // pred_check_branch
        %163 = sbr.rel (%p160) target = $region12
      $region11: #{tpu_custom_call.1} parent=5 // pred_region
        %s164 = ssub.s32 %s14, 1
        // Predicated region
        $region13: #{tpu_custom_call.1} parent=11 // pred_check
          %p165 = pneg %p61
        $region14: #{tpu_custom_call.1} parent=11 // pred_check_branch
          %167 = sbr.rel (%p165) target = $region16
        $region15: #{tpu_custom_call.1} parent=11 // pred_region
          _
        $region16: #{tpu_custom_call.1} parent=11 // pred_fallthru
          _
        // Predicated region
        $region17: #{tpu_custom_call.1} parent=11 // pred_check
          %p168 = pneg %p82
        $region18: #{tpu_custom_call.1} parent=11 // pred_check_branch
          %170 = sbr.rel (%p168) target = $region20
        $region19: #{tpu_custom_call.1} parent=11 // pred_region
          _
        $region20: #{tpu_custom_call.1} parent=11 // pred_fallthru
          _
        // Predicated region
        $region21: #{tpu_custom_call.1} parent=11 // pred_check
          %p171 = pneg %p103
        $region22: #{tpu_custom_call.1} parent=11 // pred_check_branch
          %173 = sbr.rel (%p171) target = $region24
        $region23: #{tpu_custom_call.1} parent=11 // pred_region
          _
        $region24: #{tpu_custom_call.1} parent=11 // pred_fallthru
          _
        // Predicated region
        $region25: #{tpu_custom_call.1} parent=11 // pred_check
          %p174 = pneg %p124
        $region26: #{tpu_custom_call.1} parent=11 // pred_check_branch
          %176 = sbr.rel (%p174) target = $region28
        $region27: #{tpu_custom_call.1} parent=11 // pred_region
          _
        $region28: #{tpu_custom_call.1} parent=11 // pred_fallthru
          _
      $region12: #{tpu_custom_call.1} parent=5 // pred_fallthru
        _
      %p177 = scmp.lt.s32.totalorder %s14, 2
      // Predicated region
      $region29: #{tpu_custom_call.1} parent=5 // pred_check
        %p178 = pneg %p177
      $region30: #{tpu_custom_call.1} parent=5 // pred_check_branch
        %180 = sbr.rel (%p178) target = $region32
      $region31: #{tpu_custom_call.1} parent=5 // pred_region
        // Predicated region
        $region33: #{tpu_custom_call.1} parent=31 // pred_check
          %p181 = pneg %p34
        $region34: #{tpu_custom_call.1} parent=31 // pred_check_branch
          %183 = sbr.rel (%p181) target = $region36
        $region35: #{tpu_custom_call.1} parent=31 // pred_region
          %s184 = smul.u32 32, %s14
          %p185 = scmp.lt.s32.totalorder %s184, 63
          %s186 = scalar_select %p185, %s184, 63
          %s187 = smul.addr %s186, 8
          %s188 = scalar_lea.vmem %s0, %s187
          %s189 = smul.u32 32, %s14
        $region36: #{tpu_custom_call.1} parent=31 // pred_fallthru
          _
      $region32: #{tpu_custom_call.1} parent=5 // pred_fallthru
        _
      %p190 = scmp.le.s32.totalorder 1, %s14
      %p191 = scmp.lt.s32.totalorder %s14, 3
      %p192 = pnand %p190, %p191
      %p193 = pneg %p192
      // Predicated region
      $region37: #{tpu_custom_call.1} parent=5 // pred_check
        _
      $region38: #{tpu_custom_call.1} parent=5 // pred_check_branch
        %195 = sbr.rel (%p192) target = $region40
      $region39: #{tpu_custom_call.1} parent=5 // pred_region
        %s196 = ssub.s32 %s14, 1
        %s197 = smul.u32 32, %s19
        %p198 = scmp.lt.s32.totalorder %s197, 63
        %s199 = scalar_select %p198, %s197, 63
        %s200 = smul.addr %s199, 8
        %s201 = scalar_lea.vmem %s0, %s200
        %p202 = pneg %p40
        %p203 = pneg %p37
        %p204 = pneg %p61
        %p205 = pneg %p58
        %p206 = pneg %p82
        %p207 = pneg %p79
        %p208 = pneg %p103
        %p209 = pneg %p100
        %p210 = pneg %p124
        %p211 = pneg %p121
        %p212 = pneg %p150
        %p213 = pneg %p147
        %s214 = sand.u32 %s137, 1
        %s215 = scalar_lea.sflag [#allocation3], %s214
        %s216 = sand.u32 %s137, 1
        %s217 = smul.addr %s216, 256
        %s218 = scalar_lea.vmem [#allocation2], %s217
        %s219 = smul.u32 32, %s19
        %p220 = scmp.lt.s32.totalorder %s219, 63
        %s221 = scalar_select %p220, %s219, 63
        %s222 = smul.addr %s221, 8
        %s223 = scalar_lea.vmem %s0, %s222
        %s224 = smul.u32 32, %s19
        %s225 = smul.u32 32, %s19
        %v228 = vld [vmem:[%s223] sm:$0xff]
        %v229 = vld [vmem:[%s223 + $0x8] sm:$0xff]
        %v230 = vld [vmem:[%s223 + $0x10] sm:$0xff]
        %v231 = vld [vmem:[%s223 + $0x18] sm:$0xff]
        %v232 = vld [vmem:[%s223 + $0x20] sm:$0xff]
        %v233 = vld [vmem:[%s223 + $0x28] sm:$0xff]
        %v234 = vld [vmem:[%s223 + $0x30] sm:$0xff]
        %v235 = vld [vmem:[%s223 + $0x38] sm:$0xff]
        %v236 = vld [vmem:[%s223 + $0x40] sm:$0xff]
        %v237 = vld [vmem:[%s223 + $0x48] sm:$0xff]
        %v238 = vld [vmem:[%s223 + $0x50] sm:$0xff]
        %v239 = vld [vmem:[%s223 + $0x58] sm:$0xff]
        %v240 = vld [vmem:[%s223 + $0x60] sm:$0xff]
        %v241 = vld [vmem:[%s223 + $0x68] sm:$0xff]
        %v242 = vld [vmem:[%s223 + $0x70] sm:$0xff]
        %v243 = vld [vmem:[%s223 + $0x78] sm:$0xff]
        %v244 = vld [vmem:[%s223 + $0x80] sm:$0xff]
        %v245 = vld [vmem:[%s223 + $0x88] sm:$0xff]
        %v246 = vld [vmem:[%s223 + $0x90] sm:$0xff]
        %v247 = vld [vmem:[%s223 + $0x98] sm:$0xff]
        %v248 = vld [vmem:[%s223 + $0xa0] sm:$0xff]
        %v249 = vld [vmem:[%s223 + $0xa8] sm:$0xff]
        %v250 = vld [vmem:[%s223 + $0xb0] sm:$0xff]
        %v251 = vld [vmem:[%s223 + $0xb8] sm:$0xff]
        %v252 = vld [vmem:[%s223 + $0xc0] sm:$0xff]
        %v253 = vld [vmem:[%s223 + $0xc8] sm:$0xff]
        %v254 = vld [vmem:[%s223 + $0xd0] sm:$0xff]
        %v255 = vld [vmem:[%s223 + $0xd8] sm:$0xff]
        %v256 = vld [vmem:[%s223 + $0xe0] sm:$0xff]
        %v257 = vld [vmem:[%s223 + $0xe8] sm:$0xff]
        %v258 = vld [vmem:[%s223 + $0xf0] sm:$0xff]
        %v259 = vld [vmem:[%s223 + $0xf8] sm:$0xff]
        %v260 = vpack.c.bf16 %v229, %v228
        %v261 = vpack.c.bf16 %v231, %v230
        %v262 = vpack.c.bf16 %v233, %v232
        %v263 = vpack.c.bf16 %v235, %v234
        %v264 = vpack.c.bf16 %v237, %v236
        %v265 = vpack.c.bf16 %v239, %v238
        %v266 = vpack.c.bf16 %v241, %v240
        %v267 = vpack.c.bf16 %v243, %v242
        %v268 = vpack.c.bf16 %v245, %v244
        %v269 = vpack.c.bf16 %v247, %v246
        %v270 = vpack.c.bf16 %v249, %v248
        %v271 = vpack.c.bf16 %v251, %v250
        %v272 = vpack.c.bf16 %v253, %v252
        %v273 = vpack.c.bf16 %v255, %v254
        %v274 = vpack.c.bf16 %v257, %v256
        %v275 = vpack.c.bf16 %v259, %v258
        %v276 = vld [vmem:[%s1] sm:$0xf]
        %v277 = vld [vmem:[%s1 + $0x4] sm:$0xf]
        %v278 = vld [vmem:[%s1 + $0x8] sm:$0xf]
        %v279 = vld [vmem:[%s1 + $0xc] sm:$0xf]
        %v280 = vld [vmem:[%s2] sm:$0x1]
        %v282 = vperm.slane %v280, 0
        %v288 = vunpack.c.l.b16 %v276
        %v289 = vunpack.c.l.b16 %v277
        %v290 = vunpack.c.l.b16 %v278
        %v291 = vunpack.c.l.b16 %v279
        %v292 = vpack.c.b16 %v289, %v288
        %v293 = vpack.c.b16 %v291, %v290
        %vm296 = vcmask 261120
        %v298 = vsel %vm296, %v260, 0
        %v301 = vsel %vm296, %v261, 0
        %v304 = vsel %vm296, %v262, 0
        %v307 = vsel %vm296, %v263, 0
        %v310 = vsel %vm296, %v264, 0
        %v313 = vsel %vm296, %v265, 0
        %v316 = vsel %vm296, %v266, 0
        %v319 = vsel %vm296, %v267, 0
        %v322 = vsel %vm296, %v268, 0
        %v325 = vsel %vm296, %v269, 0
        %v328 = vsel %vm296, %v270, 0
        %v331 = vsel %vm296, %v271, 0
        %v334 = vsel %vm296, %v272, 0
        %v337 = vsel %vm296, %v273, 0
        %v340 = vsel %vm296, %v274, 0
        %v343 = vsel %vm296, %v275, 0
        %345 = vmatpush.bf16.msra.mxu0 0
        %346 = vmatpush.bf16.msra.mxu0 0
        %347 = vmatpush.bf16.msra.mxu0 0
        %348 = vmatpush.bf16.msra.mxu0 0
        %349 = vmatpush.bf16.msra.mxu0 0
        %350 = vmatpush.bf16.msra.mxu0 0
        %351 = vmatpush.bf16.msra.mxu0 %v293
        %352 = vmatpush.bf16.msra.mxu0 %v292
        %353 = vmatmul.bf16.gmra.mxu0 %v298
        %v354 = vpop.f32.mrf.mxu0
        %v355 = vadd.f32 %v282, %v354
        %v356 = vpop.f32.mrf.mxu0
        %v357 = vadd.f32 %v282, %v356
        %358 = vmatmul.bf16.gmra.mxu0 %v301
        %v359 = vpop.f32.mrf.mxu0
        %v360 = vadd.f32 %v282, %v359
        %v361 = vpop.f32.mrf.mxu0
        %v362 = vadd.f32 %v282, %v361
        %363 = vmatmul.bf16.gmra.mxu0 %v304
        %v364 = vpop.f32.mrf.mxu0
        %v365 = vadd.f32 %v282, %v364
        %v366 = vpop.f32.mrf.mxu0
        %v367 = vadd.f32 %v282, %v366
        %368 = vmatmul.bf16.gmra.mxu0 %v307
        %v369 = vpop.f32.mrf.mxu0
        %v370 = vadd.f32 %v282, %v369
        %v371 = vpop.f32.mrf.mxu0
        %v372 = vadd.f32 %v282, %v371
        %373 = vmatmul.bf16.gmra.mxu0 %v310
        %v374 = vpop.f32.mrf.mxu0
        %v375 = vadd.f32 %v282, %v374
        %v376 = vpop.f32.mrf.mxu0
        %v377 = vadd.f32 %v282, %v376
        %378 = vmatmul.bf16.gmra.mxu0 %v313
        %v379 = vpop.f32.mrf.mxu0
        %v380 = vadd.f32 %v282, %v379
        %v381 = vpop.f32.mrf.mxu0
        %v382 = vadd.f32 %v282, %v381
        %383 = vmatmul.bf16.gmra.mxu0 %v316
        %v384 = vpop.f32.mrf.mxu0
        %v385 = vadd.f32 %v282, %v384
        %v386 = vpop.f32.mrf.mxu0
        %v387 = vadd.f32 %v282, %v386
        %388 = vmatmul.bf16.gmra.mxu0 %v319
        %v389 = vpop.f32.mrf.mxu0
        %v390 = vadd.f32 %v282, %v389
        %v391 = vpop.f32.mrf.mxu0
        %v392 = vadd.f32 %v282, %v391
        %393 = vmatmul.bf16.gmra.mxu0 %v322
        %v394 = vpop.f32.mrf.mxu0
        %v395 = vadd.f32 %v282, %v394
        %v396 = vpop.f32.mrf.mxu0
        %v397 = vadd.f32 %v282, %v396
        %398 = vmatmul.bf16.gmra.mxu0 %v325
        %v399 = vpop.f32.mrf.mxu0
        %v400 = vadd.f32 %v282, %v399
        %v401 = vpop.f32.mrf.mxu0
        %v402 = vadd.f32 %v282, %v401
        %403 = vmatmul.bf16.gmra.mxu0 %v328
        %v404 = vpop.f32.mrf.mxu0
        %v405 = vadd.f32 %v282, %v404
        %v406 = vpop.f32.mrf.mxu0
        %v407 = vadd.f32 %v282, %v406
        %408 = vmatmul.bf16.gmra.mxu0 %v331
        %v409 = vpop.f32.mrf.mxu0
        %v410 = vadd.f32 %v282, %v409
        %v411 = vpop.f32.mrf.mxu0
        %v412 = vadd.f32 %v282, %v411
        %413 = vmatmul.bf16.gmra.mxu0 %v334
        %v414 = vpop.f32.mrf.mxu0
        %v415 = vadd.f32 %v282, %v414
        %v416 = vpop.f32.mrf.mxu0
        %v417 = vadd.f32 %v282, %v416
        %418 = vmatmul.bf16.gmra.mxu0 %v337
        %v419 = vpop.f32.mrf.mxu0
        %v420 = vadd.f32 %v282, %v419
        %v421 = vpop.f32.mrf.mxu0
        %v422 = vadd.f32 %v282, %v421
        %423 = vmatmul.bf16.gmra.mxu0 %v340
        %v424 = vpop.f32.mrf.mxu0
        %v425 = vadd.f32 %v282, %v424
        %v426 = vpop.f32.mrf.mxu0
        %v427 = vadd.f32 %v282, %v426
        %428 = vmatmul.bf16.gmra.mxu0 %v343
        %v429 = vpop.f32.mrf.mxu0
        %v430 = vadd.f32 %v282, %v429
        %v431 = vpop.f32.mrf.mxu0
        %v432 = vadd.f32 %v282, %v431
        %433 = vdwg.mxu0
        %v434 = vmax.f32 %v355, 0.0
        %v435 = vmax.f32 %v357, 0.0
        %v436 = vmax.f32 %v360, 0.0
        %v437 = vmax.f32 %v362, 0.0
        %v438 = vmax.f32 %v365, 0.0
        %v439 = vmax.f32 %v367, 0.0
        %v440 = vmax.f32 %v370, 0.0
        %v441 = vmax.f32 %v372, 0.0
        %v442 = vmax.f32 %v375, 0.0
        %v443 = vmax.f32 %v377, 0.0
        %v444 = vmax.f32 %v380, 0.0
        %v445 = vmax.f32 %v382, 0.0
        %v446 = vmax.f32 %v385, 0.0
        %v447 = vmax.f32 %v387, 0.0
        %v448 = vmax.f32 %v390, 0.0
        %v449 = vmax.f32 %v392, 0.0
        %v450 = vmax.f32 %v395, 0.0
        %v451 = vmax.f32 %v397, 0.0
        %v452 = vmax.f32 %v400, 0.0
        %v453 = vmax.f32 %v402, 0.0
        %v454 = vmax.f32 %v405, 0.0
        %v455 = vmax.f32 %v407, 0.0
        %v456 = vmax.f32 %v410, 0.0
        %v457 = vmax.f32 %v412, 0.0
        %v458 = vmax.f32 %v415, 0.0
        %v459 = vmax.f32 %v417, 0.0
        %v460 = vmax.f32 %v420, 0.0
        %v461 = vmax.f32 %v422, 0.0
        %v462 = vmax.f32 %v425, 0.0
        %v463 = vmax.f32 %v427, 0.0
        %v464 = vmax.f32 %v430, 0.0
        %v465 = vmax.f32 %v432, 0.0
        %v466 = vpack.c.bf16 %v435, %v434
        %v467 = vpack.c.bf16 %v437, %v436
        %v468 = vpack.c.bf16 %v439, %v438
        %v469 = vpack.c.bf16 %v441, %v440
        %v470 = vpack.c.bf16 %v443, %v442
        %v471 = vpack.c.bf16 %v445, %v444
        %v472 = vpack.c.bf16 %v447, %v446
        %v473 = vpack.c.bf16 %v449, %v448
        %v474 = vpack.c.bf16 %v451, %v450
        %v475 = vpack.c.bf16 %v453, %v452
        %v476 = vpack.c.bf16 %v455, %v454
        %v477 = vpack.c.bf16 %v457, %v456
        %v478 = vpack.c.bf16 %v459, %v458
        %v479 = vpack.c.bf16 %v461, %v460
        %v480 = vpack.c.bf16 %v463, %v462
        %v481 = vpack.c.bf16 %v465, %v464
        %v482 = vld [vmem:[%s3] sm:$0xff]
        %v483 = vld [vmem:[%s3 + $0x8] sm:$0xff]
        %v484 = vld [vmem:[%s3 + $0x10] sm:$0xff]
        %v485 = vld [vmem:[%s3 + $0x18] sm:$0xff]
        %v486 = vld [vmem:[%s3 + $0x20] sm:$0xff]
        %v487 = vld [vmem:[%s3 + $0x28] sm:$0xff]
        %v488 = vld [vmem:[%s3 + $0x30] sm:$0xff]
        %v489 = vld [vmem:[%s3 + $0x38] sm:$0xff]
        %v490 = vld [vmem:[%s3 + $0x40] sm:$0xff]
        %v491 = vld [vmem:[%s3 + $0x48] sm:$0xff]
        %v492 = vld [vmem:[%s3 + $0x50] sm:$0xff]
        %v493 = vld [vmem:[%s3 + $0x58] sm:$0xff]
        %v494 = vld [vmem:[%s3 + $0x60] sm:$0xff]
        %v495 = vld [vmem:[%s3 + $0x68] sm:$0xff]
        %v496 = vld [vmem:[%s3 + $0x70] sm:$0xff]
        %v497 = vld [vmem:[%s3 + $0x78] sm:$0xff]
        %v498 = vld [vmem:[%s4] sm:$0x3]
        %v500 = vperm.slane %v498, 0
        %v501 = vperm.slane %v498, 1
        %v520 = vunpack.c.l.b16 %v482
        %v521 = vunpack.c.h.b16 %v482
        %v522 = vunpack.c.l.b16 %v483
        %v523 = vunpack.c.h.b16 %v483
        %v524 = vunpack.c.l.b16 %v484
        %v525 = vunpack.c.h.b16 %v484
        %v526 = vunpack.c.l.b16 %v485
        %v527 = vunpack.c.h.b16 %v485
        %v528 = vunpack.c.l.b16 %v486
        %v529 = vunpack.c.h.b16 %v486
        %v530 = vunpack.c.l.b16 %v487
        %v531 = vunpack.c.h.b16 %v487
        %v532 = vunpack.c.l.b16 %v488
        %v533 = vunpack.c.h.b16 %v488
        %v534 = vunpack.c.l.b16 %v489
        %v535 = vunpack.c.h.b16 %v489
        %v536 = vunpack.c.l.b16 %v490
        %v537 = vunpack.c.h.b16 %v490
        %v538 = vunpack.c.l.b16 %v491
        %v539 = vunpack.c.h.b16 %v491
        %v540 = vunpack.c.l.b16 %v492
        %v541 = vunpack.c.h.b16 %v492
        %v542 = vunpack.c.l.b16 %v493
        %v543 = vunpack.c.h.b16 %v493
        %v544 = vunpack.c.l.b16 %v494
        %v545 = vunpack.c.h.b16 %v494
        %v546 = vunpack.c.l.b16 %v495
        %v547 = vunpack.c.h.b16 %v495
        %v548 = vunpack.c.l.b16 %v496
        %v549 = vunpack.c.h.b16 %v496
        %v550 = vunpack.c.l.b16 %v497
        %v551 = vunpack.c.h.b16 %v497
        %v552 = vpack.c.b16 %v522, %v520
        %v553 = vpack.c.b16 %v523, %v521
        %v554 = vpack.c.b16 %v526, %v524
        %v555 = vpack.c.b16 %v527, %v525
        %v556 = vpack.c.b16 %v530, %v528
        %v557 = vpack.c.b16 %v531, %v529
        %v558 = vpack.c.b16 %v534, %v532
        %v559 = vpack.c.b16 %v535, %v533
        %v560 = vpack.c.b16 %v538, %v536
        %v561 = vpack.c.b16 %v539, %v537
        %v562 = vpack.c.b16 %v542, %v540
        %v563 = vpack.c.b16 %v543, %v541
        %v564 = vpack.c.b16 %v546, %v544
        %v565 = vpack.c.b16 %v547, %v545
        %v566 = vpack.c.b16 %v550, %v548
        %v567 = vpack.c.b16 %v551, %v549
        %584 = vmatpush.bf16.msra.mxu0 %v566
        %585 = vmatpush.bf16.msra.mxu0 %v564
        %586 = vmatpush.bf16.msra.mxu0 %v562
        %587 = vmatpush.bf16.msra.mxu0 %v560
        %588 = vmatpush.bf16.msra.mxu0 %v558
        %589 = vmatpush.bf16.msra.mxu0 %v556
        %590 = vmatpush.bf16.msra.mxu0 %v554
        %591 = vmatpush.bf16.msra.mxu0 %v552
        %592 = vmatmul.bf16.gmra.mxu0 %v466
        %v593 = vpop.f32.mrf.mxu0
        %v594 = vadd.f32 %v500, %v593
        %v595 = vpop.f32.mrf.mxu0
        %v596 = vadd.f32 %v500, %v595
        %597 = vmatmul.bf16.gmra.mxu0 %v467
        %v598 = vpop.f32.mrf.mxu0
        %v599 = vadd.f32 %v500, %v598
        %v600 = vpop.f32.mrf.mxu0
        %v601 = vadd.f32 %v500, %v600
        %602 = vmatmul.bf16.gmra.mxu0 %v468
        %v603 = vpop.f32.mrf.mxu0
        %v604 = vadd.f32 %v500, %v603
        %v605 = vpop.f32.mrf.mxu0
        %v606 = vadd.f32 %v500, %v605
        %607 = vmatmul.bf16.gmra.mxu0 %v469
        %v608 = vpop.f32.mrf.mxu0
        %v609 = vadd.f32 %v500, %v608
        %v610 = vpop.f32.mrf.mxu0
        %v611 = vadd.f32 %v500, %v610
        %612 = vmatmul.bf16.gmra.mxu0 %v470
        %v613 = vpop.f32.mrf.mxu0
        %v614 = vadd.f32 %v500, %v613
        %v615 = vpop.f32.mrf.mxu0
        %v616 = vadd.f32 %v500, %v615
        %617 = vmatmul.bf16.gmra.mxu0 %v471
        %v618 = vpop.f32.mrf.mxu0
        %v619 = vadd.f32 %v500, %v618
        %v620 = vpop.f32.mrf.mxu0
        %v621 = vadd.f32 %v500, %v620
        %622 = vmatmul.bf16.gmra.mxu0 %v472
        %v623 = vpop.f32.mrf.mxu0
        %v624 = vadd.f32 %v500, %v623
        %v625 = vpop.f32.mrf.mxu0
        %v626 = vadd.f32 %v500, %v625
        %627 = vmatmul.bf16.gmra.mxu0 %v473
        %v628 = vpop.f32.mrf.mxu0
        %v629 = vadd.f32 %v500, %v628
        %v630 = vpop.f32.mrf.mxu0
        %v631 = vadd.f32 %v500, %v630
        %632 = vmatmul.bf16.gmra.mxu0 %v474
        %v633 = vpop.f32.mrf.mxu0
        %v634 = vadd.f32 %v500, %v633
        %v635 = vpop.f32.mrf.mxu0
        %v636 = vadd.f32 %v500, %v635
        %637 = vmatmul.bf16.gmra.mxu0 %v475
        %v638 = vpop.f32.mrf.mxu0
        %v639 = vadd.f32 %v500, %v638
        %v640 = vpop.f32.mrf.mxu0
        %v641 = vadd.f32 %v500, %v640
        %642 = vmatmul.bf16.gmra.mxu0 %v476
        %v643 = vpop.f32.mrf.mxu0
        %v644 = vadd.f32 %v500, %v643
        %v645 = vpop.f32.mrf.mxu0
        %v646 = vadd.f32 %v500, %v645
        %647 = vmatmul.bf16.gmra.mxu0 %v477
        %v648 = vpop.f32.mrf.mxu0
        %v649 = vadd.f32 %v500, %v648
        %v650 = vpop.f32.mrf.mxu0
        %v651 = vadd.f32 %v500, %v650
        %652 = vmatmul.bf16.gmra.mxu0 %v478
        %v653 = vpop.f32.mrf.mxu0
        %v654 = vadd.f32 %v500, %v653
        %v655 = vpop.f32.mrf.mxu0
        %v656 = vadd.f32 %v500, %v655
        %657 = vmatmul.bf16.gmra.mxu0 %v479
        %v658 = vpop.f32.mrf.mxu0
        %v659 = vadd.f32 %v500, %v658
        %v660 = vpop.f32.mrf.mxu0
        %v661 = vadd.f32 %v500, %v660
        %662 = vmatmul.bf16.gmra.mxu0 %v480
        %v663 = vpop.f32.mrf.mxu0
        %v664 = vadd.f32 %v500, %v663
        %v665 = vpop.f32.mrf.mxu0
        %v666 = vadd.f32 %v500, %v665
        %667 = vmatmul.bf16.gmra.mxu0 %v481
        %v668 = vpop.f32.mrf.mxu0
        %v669 = vadd.f32 %v500, %v668
        %v670 = vpop.f32.mrf.mxu0
        %v671 = vadd.f32 %v500, %v670
        %672 = vdwg.mxu0
        %673 = vmatpush.bf16.msra.mxu0 %v567
        %674 = vmatpush.bf16.msra.mxu0 %v565
        %675 = vmatpush.bf16.msra.mxu0 %v563
        %676 = vmatpush.bf16.msra.mxu0 %v561
        %677 = vmatpush.bf16.msra.mxu0 %v559
        %678 = vmatpush.bf16.msra.mxu0 %v557
        %679 = vmatpush.bf16.msra.mxu0 %v555
        %680 = vmatpush.bf16.msra.mxu0 %v553
        %681 = vmatmul.bf16.gmra.mxu0 %v466
        %v682 = vpop.f32.mrf.mxu0
        %v683 = vadd.f32 %v501, %v682
        %v684 = vpop.f32.mrf.mxu0
        %v685 = vadd.f32 %v501, %v684
        %686 = vmatmul.bf16.gmra.mxu0 %v467
        %v687 = vpop.f32.mrf.mxu0
        %v688 = vadd.f32 %v501, %v687
        %v689 = vpop.f32.mrf.mxu0
        %v690 = vadd.f32 %v501, %v689
        %691 = vmatmul.bf16.gmra.mxu0 %v468
        %v692 = vpop.f32.mrf.mxu0
        %v693 = vadd.f32 %v501, %v692
        %v694 = vpop.f32.mrf.mxu0
        %v695 = vadd.f32 %v501, %v694
        %696 = vmatmul.bf16.gmra.mxu0 %v469
        %v697 = vpop.f32.mrf.mxu0
        %v698 = vadd.f32 %v501, %v697
        %v699 = vpop.f32.mrf.mxu0
        %v700 = vadd.f32 %v501, %v699
        %701 = vmatmul.bf16.gmra.mxu0 %v470
        %v702 = vpop.f32.mrf.mxu0
        %v703 = vadd.f32 %v501, %v702
        %v704 = vpop.f32.mrf.mxu0
        %v705 = vadd.f32 %v501, %v704
        %706 = vmatmul.bf16.gmra.mxu0 %v471
        %v707 = vpop.f32.mrf.mxu0
        %v708 = vadd.f32 %v501, %v707
        %v709 = vpop.f32.mrf.mxu0
        %v710 = vadd.f32 %v501, %v709
        %711 = vmatmul.bf16.gmra.mxu0 %v472
        %v712 = vpop.f32.mrf.mxu0
        %v713 = vadd.f32 %v501, %v712
        %v714 = vpop.f32.mrf.mxu0
        %v715 = vadd.f32 %v501, %v714
        %716 = vmatmul.bf16.gmra.mxu0 %v473
        %v717 = vpop.f32.mrf.mxu0
        %v718 = vadd.f32 %v501, %v717
        %v719 = vpop.f32.mrf.mxu0
        %v720 = vadd.f32 %v501, %v719
        %721 = vmatmul.bf16.gmra.mxu0 %v474
        %v722 = vpop.f32.mrf.mxu0
        %v723 = vadd.f32 %v501, %v722
        %v724 = vpop.f32.mrf.mxu0
        %v725 = vadd.f32 %v501, %v724
        %726 = vmatmul.bf16.gmra.mxu0 %v475
        %v727 = vpop.f32.mrf.mxu0
        %v728 = vadd.f32 %v501, %v727
        %v729 = vpop.f32.mrf.mxu0
        %v730 = vadd.f32 %v501, %v729
        %731 = vmatmul.bf16.gmra.mxu0 %v476
        %v732 = vpop.f32.mrf.mxu0
        %v733 = vadd.f32 %v501, %v732
        %v734 = vpop.f32.mrf.mxu0
        %v735 = vadd.f32 %v501, %v734
        %736 = vmatmul.bf16.gmra.mxu0 %v477
        %v737 = vpop.f32.mrf.mxu0
        %v738 = vadd.f32 %v501, %v737
        %v739 = vpop.f32.mrf.mxu0
        %v740 = vadd.f32 %v501, %v739
        %741 = vmatmul.bf16.gmra.mxu0 %v478
        %v742 = vpop.f32.mrf.mxu0
        %v743 = vadd.f32 %v501, %v742
        %v744 = vpop.f32.mrf.mxu0
        %v745 = vadd.f32 %v501, %v744
        %746 = vmatmul.bf16.gmra.mxu0 %v479
        %v747 = vpop.f32.mrf.mxu0
        %v748 = vadd.f32 %v501, %v747
        %v749 = vpop.f32.mrf.mxu0
        %v750 = vadd.f32 %v501, %v749
        %751 = vmatmul.bf16.gmra.mxu0 %v480
        %v752 = vpop.f32.mrf.mxu0
        %v753 = vadd.f32 %v501, %v752
        %v754 = vpop.f32.mrf.mxu0
        %v755 = vadd.f32 %v501, %v754
        %756 = vmatmul.bf16.gmra.mxu0 %v481
        %v757 = vpop.f32.mrf.mxu0
        %v758 = vadd.f32 %v501, %v757
        %v759 = vpop.f32.mrf.mxu0
        %v760 = vadd.f32 %v501, %v759
        %761 = vdwg.mxu0
        %v762 = vpack.c.bf16 %v683, %v594
        %v763 = vpack.c.bf16 %v685, %v596
        %v764 = vpack.c.bf16 %v688, %v599
        %v765 = vpack.c.bf16 %v690, %v601
        %v766 = vpack.c.bf16 %v693, %v604
        %v767 = vpack.c.bf16 %v695, %v606
        %v768 = vpack.c.bf16 %v698, %v609
        %v769 = vpack.c.bf16 %v700, %v611
        %v770 = vpack.c.bf16 %v703, %v614
        %v771 = vpack.c.bf16 %v705, %v616
        %v772 = vpack.c.bf16 %v708, %v619
        %v773 = vpack.c.bf16 %v710, %v621
        %v774 = vpack.c.bf16 %v713, %v624
        %v775 = vpack.c.bf16 %v715, %v626
        %v776 = vpack.c.bf16 %v718, %v629
        %v777 = vpack.c.bf16 %v720, %v631
        %v778 = vpack.c.bf16 %v723, %v634
        %v779 = vpack.c.bf16 %v725, %v636
        %v780 = vpack.c.bf16 %v728, %v639
        %v781 = vpack.c.bf16 %v730, %v641
        %v782 = vpack.c.bf16 %v733, %v644
        %v783 = vpack.c.bf16 %v735, %v646
        %v784 = vpack.c.bf16 %v738, %v649
        %v785 = vpack.c.bf16 %v740, %v651
        %v786 = vpack.c.bf16 %v743, %v654
        %v787 = vpack.c.bf16 %v745, %v656
        %v788 = vpack.c.bf16 %v748, %v659
        %v789 = vpack.c.bf16 %v750, %v661
        %v790 = vpack.c.bf16 %v753, %v664
        %v791 = vpack.c.bf16 %v755, %v666
        %v792 = vpack.c.bf16 %v758, %v669
        %v793 = vpack.c.bf16 %v760, %v671
        %v794 = vxor.u32 %v762, 2147516416
        %v795 = vxor.u32 %v763, 2147516416
        %v796 = vxor.u32 %v764, 2147516416
        %v797 = vxor.u32 %v765, 2147516416
        %v798 = vxor.u32 %v766, 2147516416
        %v799 = vxor.u32 %v767, 2147516416
        %v800 = vxor.u32 %v768, 2147516416
        %v801 = vxor.u32 %v769, 2147516416
        %v802 = vxor.u32 %v770, 2147516416
        %v803 = vxor.u32 %v771, 2147516416
        %v804 = vxor.u32 %v772, 2147516416
        %v805 = vxor.u32 %v773, 2147516416
        %v806 = vxor.u32 %v774, 2147516416
        %v807 = vxor.u32 %v775, 2147516416
        %v808 = vxor.u32 %v776, 2147516416
        %v809 = vxor.u32 %v777, 2147516416
        %v810 = vxor.u32 %v778, 2147516416
        %v811 = vxor.u32 %v779, 2147516416
        %v812 = vxor.u32 %v780, 2147516416
        %v813 = vxor.u32 %v781, 2147516416
        %v814 = vxor.u32 %v782, 2147516416
        %v815 = vxor.u32 %v783, 2147516416
        %v816 = vxor.u32 %v784, 2147516416
        %v817 = vxor.u32 %v785, 2147516416
        %v818 = vxor.u32 %v786, 2147516416
        %v819 = vxor.u32 %v787, 2147516416
        %v820 = vxor.u32 %v788, 2147516416
        %v821 = vxor.u32 %v789, 2147516416
        %v822 = vxor.u32 %v790, 2147516416
        %v823 = vxor.u32 %v791, 2147516416
        %v824 = vxor.u32 %v792, 2147516416
        %v825 = vxor.u32 %v793, 2147516416
        %v826 = vunpack.c.l.bf16 %v794
        %v827 = vunpack.c.h.bf16 %v794
        %v828 = vunpack.c.l.bf16 %v795
        %v829 = vunpack.c.h.bf16 %v795
        %v830 = vunpack.c.l.bf16 %v796
        %v831 = vunpack.c.h.bf16 %v796
        %v832 = vunpack.c.l.bf16 %v797
        %v833 = vunpack.c.h.bf16 %v797
        %v834 = vunpack.c.l.bf16 %v798
        %v835 = vunpack.c.h.bf16 %v798
        %v836 = vunpack.c.l.bf16 %v799
        %v837 = vunpack.c.h.bf16 %v799
        %v838 = vunpack.c.l.bf16 %v800
        %v839 = vunpack.c.h.bf16 %v800
        %v840 = vunpack.c.l.bf16 %v801
        %v841 = vunpack.c.h.bf16 %v801
        %v842 = vunpack.c.l.bf16 %v802
        %v843 = vunpack.c.h.bf16 %v802
        %v844 = vunpack.c.l.bf16 %v803
        %v845 = vunpack.c.h.bf16 %v803
        %v846 = vunpack.c.l.bf16 %v804
        %v847 = vunpack.c.h.bf16 %v804
        %v848 = vunpack.c.l.bf16 %v805
        %v849 = vunpack.c.h.bf16 %v805
        %v850 = vunpack.c.l.bf16 %v806
        %v851 = vunpack.c.h.bf16 %v806
        %v852 = vunpack.c.l.bf16 %v807
        %v853 = vunpack.c.h.bf16 %v807
        %v854 = vunpack.c.l.bf16 %v808
        %v855 = vunpack.c.h.bf16 %v808
        %v856 = vunpack.c.l.bf16 %v809
        %v857 = vunpack.c.h.bf16 %v809
        %v858 = vunpack.c.l.bf16 %v810
        %v859 = vunpack.c.h.bf16 %v810
        %v860 = vunpack.c.l.bf16 %v811
        %v861 = vunpack.c.h.bf16 %v811
        %v862 = vunpack.c.l.bf16 %v812
        %v863 = vunpack.c.h.bf16 %v812
        %v864 = vunpack.c.l.bf16 %v813
        %v865 = vunpack.c.h.bf16 %v813
        %v866 = vunpack.c.l.bf16 %v814
        %v867 = vunpack.c.h.bf16 %v814
        %v868 = vunpack.c.l.bf16 %v815
        %v869 = vunpack.c.h.bf16 %v815
        %v870 = vunpack.c.l.bf16 %v816
        %v871 = vunpack.c.h.bf16 %v816
        %v872 = vunpack.c.l.bf16 %v817
        %v873 = vunpack.c.h.bf16 %v817
        %v874 = vunpack.c.l.bf16 %v818
        %v875 = vunpack.c.h.bf16 %v818
        %v876 = vunpack.c.l.bf16 %v819
        %v877 = vunpack.c.h.bf16 %v819
        %v878 = vunpack.c.l.bf16 %v820
        %v879 = vunpack.c.h.bf16 %v820
        %v880 = vunpack.c.l.bf16 %v821
        %v881 = vunpack.c.h.bf16 %v821
        %v882 = vunpack.c.l.bf16 %v822
        %v883 = vunpack.c.h.bf16 %v822
        %v884 = vunpack.c.l.bf16 %v823
        %v885 = vunpack.c.h.bf16 %v823
        %v886 = vunpack.c.l.bf16 %v824
        %v887 = vunpack.c.h.bf16 %v824
        %v888 = vunpack.c.l.bf16 %v825
        %v889 = vunpack.c.h.bf16 %v825
        %v890 = vmul.f32 %v826, 1.442695
        %v891 = vpow.pop %v890
        %v892 = vmul.f32 %v827, 1.442695
        %v893 = vpow.pop %v892
        %v894 = vmul.f32 %v828, 1.442695
        %v895 = vpow.pop %v894
        %v896 = vmul.f32 %v829, 1.442695
        %v897 = vpow.pop %v896
        %v898 = vmul.f32 %v830, 1.442695
        %v899 = vpow.pop %v898
        %v900 = vmul.f32 %v831, 1.442695
        %v901 = vpow.pop %v900
        %v902 = vmul.f32 %v832, 1.442695
        %v903 = vpow.pop %v902
        %v904 = vmul.f32 %v833, 1.442695
        %v905 = vpow.pop %v904
        %v906 = vmul.f32 %v834, 1.442695
        %v907 = vpow.pop %v906
        %v908 = vmul.f32 %v835, 1.442695
        %v909 = vpow.pop %v908
        %v910 = vmul.f32 %v836, 1.442695
        %v911 = vpow.pop %v910
        %v912 = vmul.f32 %v837, 1.442695
        %v913 = vpow.pop %v912
        %v914 = vmul.f32 %v838, 1.442695
        %v915 = vpow.pop %v914
        %v916 = vmul.f32 %v839, 1.442695
        %v917 = vpow.pop %v916
        %v918 = vmul.f32 %v840, 1.442695
        %v919 = vpow.pop %v918
        %v920 = vmul.f32 %v841, 1.442695
        %v921 = vpow.pop %v920
        %v922 = vmul.f32 %v842, 1.442695
        %v923 = vpow.pop %v922
        %v924 = vmul.f32 %v843, 1.442695
        %v925 = vpow.pop %v924
        %v926 = vmul.f32 %v844, 1.442695
        %v927 = vpow.pop %v926
        %v928 = vmul.f32 %v845, 1.442695
        %v929 = vpow.pop %v928
        %v930 = vmul.f32 %v846, 1.442695
        %v931 = vpow.pop %v930
        %v932 = vmul.f32 %v847, 1.442695
        %v933 = vpow.pop %v932
        %v934 = vmul.f32 %v848, 1.442695
        %v935 = vpow.pop %v934
        %v936 = vmul.f32 %v849, 1.442695
        %v937 = vpow.pop %v936
        %v938 = vmul.f32 %v850, 1.442695
        %v939 = vpow.pop %v938
        %v940 = vmul.f32 %v851, 1.442695
        %v941 = vpow.pop %v940
        %v942 = vmul.f32 %v852, 1.442695
        %v943 = vpow.pop %v942
        %v944 = vmul.f32 %v853, 1.442695
        %v945 = vpow.pop %v944
        %v946 = vmul.f32 %v854, 1.442695
        %v947 = vpow.pop %v946
        %v948 = vmul.f32 %v855, 1.442695
        %v949 = vpow.pop %v948
        %v950 = vmul.f32 %v856, 1.442695
        %v951 = vpow.pop %v950
        %v952 = vmul.f32 %v857, 1.442695
        %v953 = vpow.pop %v952
        %v954 = vmul.f32 %v858, 1.442695
        %v955 = vpow.pop %v954
        %v956 = vmul.f32 %v859, 1.442695
        %v957 = vpow.pop %v956
        %v958 = vmul.f32 %v860, 1.442695
        %v959 = vpow.pop %v958
        %v960 = vmul.f32 %v861, 1.442695
        %v961 = vpow.pop %v960
        %v962 = vmul.f32 %v862, 1.442695
        %v963 = vpow.pop %v962
        %v964 = vmul.f32 %v863, 1.442695
        %v965 = vpow.pop %v964
        %v966 = vmul.f32 %v864, 1.442695
        %v967 = vpow.pop %v966
        %v968 = vmul.f32 %v865, 1.442695
        %v969 = vpow.pop %v968
        %v970 = vmul.f32 %v866, 1.442695
        %v971 = vpow.pop %v970
        %v972 = vmul.f32 %v867, 1.442695
        %v973 = vpow.pop %v972
        %v974 = vmul.f32 %v868, 1.442695
        %v975 = vpow.pop %v974
        %v976 = vmul.f32 %v869, 1.442695
        %v977 = vpow.pop %v976
        %v978 = vmul.f32 %v870, 1.442695
        %v979 = vpow.pop %v978
        %v980 = vmul.f32 %v871, 1.442695
        %v981 = vpow.pop %v980
        %v982 = vmul.f32 %v872, 1.442695
        %v983 = vpow.pop %v982
        %v984 = vmul.f32 %v873, 1.442695
        %v985 = vpow.pop %v984
        %v986 = vmul.f32 %v874, 1.442695
        %v987 = vpow.pop %v986
        %v988 = vmul.f32 %v875, 1.442695
        %v989 = vpow.pop %v988
        %v990 = vmul.f32 %v876, 1.442695
        %v991 = vpow.pop %v990
        %v992 = vmul.f32 %v877, 1.442695
        %v993 = vpow.pop %v992
        %v994 = vmul.f32 %v878, 1.442695
        %v995 = vpow.pop %v994
        %v996 = vmul.f32 %v879, 1.442695
        %v997 = vpow.pop %v996
        %v998 = vmul.f32 %v880, 1.442695
        %v999 = vpow.pop %v998
        %v1000 = vmul.f32 %v881, 1.442695
        %v1001 = vpow.pop %v1000
        %v1002 = vmul.f32 %v882, 1.442695
        %v1003 = vpow.pop %v1002
        %v1004 = vmul.f32 %v883, 1.442695
        %v1005 = vpow.pop %v1004
        %v1006 = vmul.f32 %v884, 1.442695
        %v1007 = vpow.pop %v1006
        %v1008 = vmul.f32 %v885, 1.442695
        %v1009 = vpow.pop %v1008
        %v1010 = vmul.f32 %v886, 1.442695
        %v1011 = vpow.pop %v1010
        %v1012 = vmul.f32 %v887, 1.442695
        %v1013 = vpow.pop %v1012
        %v1014 = vmul.f32 %v888, 1.442695
        %v1015 = vpow.pop %v1014
        %v1016 = vmul.f32 %v889, 1.442695
        %v1017 = vpow.pop %v1016
        %v1018 = vpack.c.bf16 %v893, %v891
        %v1019 = vpack.c.bf16 %v897, %v895
        %v1020 = vpack.c.bf16 %v901, %v899
        %v1021 = vpack.c.bf16 %v905, %v903
        %v1022 = vpack.c.bf16 %v909, %v907
        %v1023 = vpack.c.bf16 %v913, %v911
        %v1024 = vpack.c.bf16 %v917, %v915
        %v1025 = vpack.c.bf16 %v921, %v919
        %v1026 = vpack.c.bf16 %v925, %v923
        %v1027 = vpack.c.bf16 %v929, %v927
        %v1028 = vpack.c.bf16 %v933, %v931
        %v1029 = vpack.c.bf16 %v937, %v935
        %v1030 = vpack.c.bf16 %v941, %v939
        %v1031 = vpack.c.bf16 %v945, %v943
        %v1032 = vpack.c.bf16 %v949, %v947
        %v1033 = vpack.c.bf16 %v953, %v951
        %v1034 = vpack.c.bf16 %v957, %v955
        %v1035 = vpack.c.bf16 %v961, %v959
        %v1036 = vpack.c.bf16 %v965, %v963
        %v1037 = vpack.c.bf16 %v969, %v967
        %v1038 = vpack.c.bf16 %v973, %v971
        %v1039 = vpack.c.bf16 %v977, %v975
        %v1040 = vpack.c.bf16 %v981, %v979
        %v1041 = vpack.c.bf16 %v985, %v983
        %v1042 = vpack.c.bf16 %v989, %v987
        %v1043 = vpack.c.bf16 %v993, %v991
        %v1044 = vpack.c.bf16 %v997, %v995
        %v1045 = vpack.c.bf16 %v1001, %v999
        %v1046 = vpack.c.bf16 %v1005, %v1003
        %v1047 = vpack.c.bf16 %v1009, %v1007
        %v1048 = vpack.c.bf16 %v1013, %v1011
        %v1049 = vpack.c.bf16 %v1017, %v1015
        %v1050 = vunpack.c.l.bf16 %v1018
        %v1051 = vunpack.c.h.bf16 %v1018
        %v1052 = vunpack.c.l.bf16 %v1019
        %v1053 = vunpack.c.h.bf16 %v1019
        %v1054 = vunpack.c.l.bf16 %v1020
        %v1055 = vunpack.c.h.bf16 %v1020
        %v1056 = vunpack.c.l.bf16 %v1021
        %v1057 = vunpack.c.h.bf16 %v1021
        %v1058 = vunpack.c.l.bf16 %v1022
        %v1059 = vunpack.c.h.bf16 %v1022
        %v1060 = vunpack.c.l.bf16 %v1023
        %v1061 = vunpack.c.h.bf16 %v1023
        %v1062 = vunpack.c.l.bf16 %v1024
        %v1063 = vunpack.c.h.bf16 %v1024
        %v1064 = vunpack.c.l.bf16 %v1025
        %v1065 = vunpack.c.h.bf16 %v1025
        %v1066 = vunpack.c.l.bf16 %v1026
        %v1067 = vunpack.c.h.bf16 %v1026
        %v1068 = vunpack.c.l.bf16 %v1027
        %v1069 = vunpack.c.h.bf16 %v1027
        %v1070 = vunpack.c.l.bf16 %v1028
        %v1071 = vunpack.c.h.bf16 %v1028
        %v1072 = vunpack.c.l.bf16 %v1029
        %v1073 = vunpack.c.h.bf16 %v1029
        %v1074 = vunpack.c.l.bf16 %v1030
        %v1075 = vunpack.c.h.bf16 %v1030
        %v1076 = vunpack.c.l.bf16 %v1031
        %v1077 = vunpack.c.h.bf16 %v1031
        %v1078 = vunpack.c.l.bf16 %v1032
        %v1079 = vunpack.c.h.bf16 %v1032
        %v1080 = vunpack.c.l.bf16 %v1033
        %v1081 = vunpack.c.h.bf16 %v1033
        %v1082 = vunpack.c.l.bf16 %v1034
        %v1083 = vunpack.c.h.bf16 %v1034
        %v1084 = vunpack.c.l.bf16 %v1035
        %v1085 = vunpack.c.h.bf16 %v1035
        %v1086 = vunpack.c.l.bf16 %v1036
        %v1087 = vunpack.c.h.bf16 %v1036
        %v1088 = vunpack.c.l.bf16 %v1037
        %v1089 = vunpack.c.h.bf16 %v1037
        %v1090 = vunpack.c.l.bf16 %v1038
        %v1091 = vunpack.c.h.bf16 %v1038
        %v1092 = vunpack.c.l.bf16 %v1039
        %v1093 = vunpack.c.h.bf16 %v1039
        %v1094 = vunpack.c.l.bf16 %v1040
        %v1095 = vunpack.c.h.bf16 %v1040
        %v1096 = vunpack.c.l.bf16 %v1041
        %v1097 = vunpack.c.h.bf16 %v1041
        %v1098 = vunpack.c.l.bf16 %v1042
        %v1099 = vunpack.c.h.bf16 %v1042
        %v1100 = vunpack.c.l.bf16 %v1043
        %v1101 = vunpack.c.h.bf16 %v1043
        %v1102 = vunpack.c.l.bf16 %v1044
        %v1103 = vunpack.c.h.bf16 %v1044
        %v1104 = vunpack.c.l.bf16 %v1045
        %v1105 = vunpack.c.h.bf16 %v1045
        %v1106 = vunpack.c.l.bf16 %v1046
        %v1107 = vunpack.c.h.bf16 %v1046
        %v1108 = vunpack.c.l.bf16 %v1047
        %v1109 = vunpack.c.h.bf16 %v1047
        %v1110 = vunpack.c.l.bf16 %v1048
        %v1111 = vunpack.c.h.bf16 %v1048
        %v1112 = vunpack.c.l.bf16 %v1049
        %v1113 = vunpack.c.h.bf16 %v1049
        %v1114 = vadd.f32 %v1050, 1.0
        %v1115 = vadd.f32 %v1051, 1.0
        %v1116 = vadd.f32 %v1052, 1.0
        %v1117 = vadd.f32 %v1053, 1.0
        %v1118 = vadd.f32 %v1054, 1.0
        %v1119 = vadd.f32 %v1055, 1.0
        %v1120 = vadd.f32 %v1056, 1.0
        %v1121 = vadd.f32 %v1057, 1.0
        %v1122 = vadd.f32 %v1058, 1.0
        %v1123 = vadd.f32 %v1059, 1.0
        %v1124 = vadd.f32 %v1060, 1.0
        %v1125 = vadd.f32 %v1061, 1.0
        %v1126 = vadd.f32 %v1062, 1.0
        %v1127 = vadd.f32 %v1063, 1.0
        %v1128 = vadd.f32 %v1064, 1.0
        %v1129 = vadd.f32 %v1065, 1.0
        %v1130 = vadd.f32 %v1066, 1.0
        %v1131 = vadd.f32 %v1067, 1.0
        %v1132 = vadd.f32 %v1068, 1.0
        %v1133 = vadd.f32 %v1069, 1.0
        %v1134 = vadd.f32 %v1070, 1.0
        %v1135 = vadd.f32 %v1071, 1.0
        %v1136 = vadd.f32 %v1072, 1.0
        %v1137 = vadd.f32 %v1073, 1.0
        %v1138 = vadd.f32 %v1074, 1.0
        %v1139 = vadd.f32 %v1075, 1.0
        %v1140 = vadd.f32 %v1076, 1.0
        %v1141 = vadd.f32 %v1077, 1.0
        %v1142 = vadd.f32 %v1078, 1.0
        %v1143 = vadd.f32 %v1079, 1.0
        %v1144 = vadd.f32 %v1080, 1.0
        %v1145 = vadd.f32 %v1081, 1.0
        %v1146 = vadd.f32 %v1082, 1.0
        %v1147 = vadd.f32 %v1083, 1.0
        %v1148 = vadd.f32 %v1084, 1.0
        %v1149 = vadd.f32 %v1085, 1.0
        %v1150 = vadd.f32 %v1086, 1.0
        %v1151 = vadd.f32 %v1087, 1.0
        %v1152 = vadd.f32 %v1088, 1.0
        %v1153 = vadd.f32 %v1089, 1.0
        %v1154 = vadd.f32 %v1090, 1.0
        %v1155 = vadd.f32 %v1091, 1.0
        %v1156 = vadd.f32 %v1092, 1.0
        %v1157 = vadd.f32 %v1093, 1.0
        %v1158 = vadd.f32 %v1094, 1.0
        %v1159 = vadd.f32 %v1095, 1.0
        %v1160 = vadd.f32 %v1096, 1.0
        %v1161 = vadd.f32 %v1097, 1.0
        %v1162 = vadd.f32 %v1098, 1.0
        %v1163 = vadd.f32 %v1099, 1.0
        %v1164 = vadd.f32 %v1100, 1.0
        %v1165 = vadd.f32 %v1101, 1.0
        %v1166 = vadd.f32 %v1102, 1.0
        %v1167 = vadd.f32 %v1103, 1.0
        %v1168 = vadd.f32 %v1104, 1.0
        %v1169 = vadd.f32 %v1105, 1.0
        %v1170 = vadd.f32 %v1106, 1.0
        %v1171 = vadd.f32 %v1107, 1.0
        %v1172 = vadd.f32 %v1108, 1.0
        %v1173 = vadd.f32 %v1109, 1.0
        %v1174 = vadd.f32 %v1110, 1.0
        %v1175 = vadd.f32 %v1111, 1.0
        %v1176 = vadd.f32 %v1112, 1.0
        %v1177 = vadd.f32 %v1113, 1.0
        %v1178 = vpack.c.bf16 %v1115, %v1114
        %v1179 = vpack.c.bf16 %v1117, %v1116
        %v1180 = vpack.c.bf16 %v1119, %v1118
        %v1181 = vpack.c.bf16 %v1121, %v1120
        %v1182 = vpack.c.bf16 %v1123, %v1122
        %v1183 = vpack.c.bf16 %v1125, %v1124
        %v1184 = vpack.c.bf16 %v1127, %v1126
        %v1185 = vpack.c.bf16 %v1129, %v1128
        %v1186 = vpack.c.bf16 %v1131, %v1130
        %v1187 = vpack.c.bf16 %v1133, %v1132
        %v1188 = vpack.c.bf16 %v1135, %v1134
        %v1189 = vpack.c.bf16 %v1137, %v1136
        %v1190 = vpack.c.bf16 %v1139, %v1138
        %v1191 = vpack.c.bf16 %v1141, %v1140
        %v1192 = vpack.c.bf16 %v1143, %v1142
        %v1193 = vpack.c.bf16 %v1145, %v1144
        %v1194 = vpack.c.bf16 %v1147, %v1146
        %v1195 = vpack.c.bf16 %v1149, %v1148
        %v1196 = vpack.c.bf16 %v1151, %v1150
        %v1197 = vpack.c.bf16 %v1153, %v1152
        %v1198 = vpack.c.bf16 %v1155, %v1154
        %v1199 = vpack.c.bf16 %v1157, %v1156
        %v1200 = vpack.c.bf16 %v1159, %v1158
        %v1201 = vpack.c.bf16 %v1161, %v1160
        %v1202 = vpack.c.bf16 %v1163, %v1162
        %v1203 = vpack.c.bf16 %v1165, %v1164
        %v1204 = vpack.c.bf16 %v1167, %v1166
        %v1205 = vpack.c.bf16 %v1169, %v1168
        %v1206 = vpack.c.bf16 %v1171, %v1170
        %v1207 = vpack.c.bf16 %v1173, %v1172
        %v1208 = vpack.c.bf16 %v1175, %v1174
        %v1209 = vpack.c.bf16 %v1177, %v1176
        %v1210 = vunpack.c.h.bf16 1065369472
        %v1211 = vunpack.c.l.bf16 1065369472
        %v1212 = vunpack.c.h.bf16 %v1178
        %v1213 = vunpack.c.l.bf16 %v1178
        %v1214 = vrcp.pop %v1212
        %v1215 = vmul.f32 %v1210, %v1214
        %v1216 = vrcp.pop %v1213
        %v1217 = vmul.f32 %v1211, %v1216
        %v1218 = vpack.c.bf16 %v1215, %v1217
        %v1219 = vunpack.c.h.bf16 %v1179
        %v1220 = vunpack.c.l.bf16 %v1179
        %v1221 = vrcp.pop %v1219
        %v1222 = vmul.f32 %v1210, %v1221
        %v1223 = vrcp.pop %v1220
        %v1224 = vmul.f32 %v1211, %v1223
        %v1225 = vpack.c.bf16 %v1222, %v1224
        %v1226 = vunpack.c.h.bf16 %v1180
        %v1227 = vunpack.c.l.bf16 %v1180
        %v1228 = vrcp.pop %v1226
        %v1229 = vmul.f32 %v1210, %v1228
        %v1230 = vrcp.pop %v1227
        %v1231 = vmul.f32 %v1211, %v1230
        %v1232 = vpack.c.bf16 %v1229, %v1231
        %v1233 = vunpack.c.h.bf16 %v1181
        %v1234 = vunpack.c.l.bf16 %v1181
        %v1235 = vrcp.pop %v1233
        %v1236 = vmul.f32 %v1210, %v1235
        %v1237 = vrcp.pop %v1234
        %v1238 = vmul.f32 %v1211, %v1237
        %v1239 = vpack.c.bf16 %v1236, %v1238
        %v1240 = vunpack.c.h.bf16 %v1182
        %v1241 = vunpack.c.l.bf16 %v1182
        %v1242 = vrcp.pop %v1240
        %v1243 = vmul.f32 %v1210, %v1242
        %v1244 = vrcp.pop %v1241
        %v1245 = vmul.f32 %v1211, %v1244
        %v1246 = vpack.c.bf16 %v1243, %v1245
        %v1247 = vunpack.c.h.bf16 %v1183
        %v1248 = vunpack.c.l.bf16 %v1183
        %v1249 = vrcp.pop %v1247
        %v1250 = vmul.f32 %v1210, %v1249
        %v1251 = vrcp.pop %v1248
        %v1252 = vmul.f32 %v1211, %v1251
        %v1253 = vpack.c.bf16 %v1250, %v1252
        %v1254 = vunpack.c.h.bf16 %v1184
        %v1255 = vunpack.c.l.bf16 %v1184
        %v1256 = vrcp.pop %v1254
        %v1257 = vmul.f32 %v1210, %v1256
        %v1258 = vrcp.pop %v1255
        %v1259 = vmul.f32 %v1211, %v1258
        %v1260 = vpack.c.bf16 %v1257, %v1259
        %v1261 = vunpack.c.h.bf16 %v1185
        %v1262 = vunpack.c.l.bf16 %v1185
        %v1263 = vrcp.pop %v1261
        %v1264 = vmul.f32 %v1210, %v1263
        %v1265 = vrcp.pop %v1262
        %v1266 = vmul.f32 %v1211, %v1265
        %v1267 = vpack.c.bf16 %v1264, %v1266
        %v1268 = vunpack.c.h.bf16 %v1186
        %v1269 = vunpack.c.l.bf16 %v1186
        %v1270 = vrcp.pop %v1268
        %v1271 = vmul.f32 %v1210, %v1270
        %v1272 = vrcp.pop %v1269
        %v1273 = vmul.f32 %v1211, %v1272
        %v1274 = vpack.c.bf16 %v1271, %v1273
        %v1275 = vunpack.c.h.bf16 %v1187
        %v1276 = vunpack.c.l.bf16 %v1187
        %v1277 = vrcp.pop %v1275
        %v1278 = vmul.f32 %v1210, %v1277
        %v1279 = vrcp.pop %v1276
        %v1280 = vmul.f32 %v1211, %v1279
        %v1281 = vpack.c.bf16 %v1278, %v1280
        %v1282 = vunpack.c.h.bf16 %v1188
        %v1283 = vunpack.c.l.bf16 %v1188
        %v1284 = vrcp.pop %v1282
        %v1285 = vmul.f32 %v1210, %v1284
        %v1286 = vrcp.pop %v1283
        %v1287 = vmul.f32 %v1211, %v1286
        %v1288 = vpack.c.bf16 %v1285, %v1287
        %v1289 = vunpack.c.h.bf16 %v1189
        %v1290 = vunpack.c.l.bf16 %v1189
        %v1291 = vrcp.pop %v1289
        %v1292 = vmul.f32 %v1210, %v1291
        %v1293 = vrcp.pop %v1290
        %v1294 = vmul.f32 %v1211, %v1293
        %v1295 = vpack.c.bf16 %v1292, %v1294
        %v1296 = vunpack.c.h.bf16 %v1190
        %v1297 = vunpack.c.l.bf16 %v1190
        %v1298 = vrcp.pop %v1296
        %v1299 = vmul.f32 %v1210, %v1298
        %v1300 = vrcp.pop %v1297
        %v1301 = vmul.f32 %v1211, %v1300
        %v1302 = vpack.c.bf16 %v1299, %v1301
        %v1303 = vunpack.c.h.bf16 %v1191
        %v1304 = vunpack.c.l.bf16 %v1191
        %v1305 = vrcp.pop %v1303
        %v1306 = vmul.f32 %v1210, %v1305
        %v1307 = vrcp.pop %v1304
        %v1308 = vmul.f32 %v1211, %v1307
        %v1309 = vpack.c.bf16 %v1306, %v1308
        %v1310 = vunpack.c.h.bf16 %v1192
        %v1311 = vunpack.c.l.bf16 %v1192
        %v1312 = vrcp.pop %v1310
        %v1313 = vmul.f32 %v1210, %v1312
        %v1314 = vrcp.pop %v1311
        %v1315 = vmul.f32 %v1211, %v1314
        %v1316 = vpack.c.bf16 %v1313, %v1315
        %v1317 = vunpack.c.h.bf16 %v1193
        %v1318 = vunpack.c.l.bf16 %v1193
        %v1319 = vrcp.pop %v1317
        %v1320 = vmul.f32 %v1210, %v1319
        %v1321 = vrcp.pop %v1318
        %v1322 = vmul.f32 %v1211, %v1321
        %v1323 = vpack.c.bf16 %v1320, %v1322
        %v1324 = vunpack.c.h.bf16 %v1194
        %v1325 = vunpack.c.l.bf16 %v1194
        %v1326 = vrcp.pop %v1324
        %v1327 = vmul.f32 %v1210, %v1326
        %v1328 = vrcp.pop %v1325
        %v1329 = vmul.f32 %v1211, %v1328
        %v1330 = vpack.c.bf16 %v1327, %v1329
        %v1331 = vunpack.c.h.bf16 %v1195
        %v1332 = vunpack.c.l.bf16 %v1195
        %v1333 = vrcp.pop %v1331
        %v1334 = vmul.f32 %v1210, %v1333
        %v1335 = vrcp.pop %v1332
        %v1336 = vmul.f32 %v1211, %v1335
        %v1337 = vpack.c.bf16 %v1334, %v1336
        %v1338 = vunpack.c.h.bf16 %v1196
        %v1339 = vunpack.c.l.bf16 %v1196
        %v1340 = vrcp.pop %v1338
        %v1341 = vmul.f32 %v1210, %v1340
        %v1342 = vrcp.pop %v1339
        %v1343 = vmul.f32 %v1211, %v1342
        %v1344 = vpack.c.bf16 %v1341, %v1343
        %v1345 = vunpack.c.h.bf16 %v1197
        %v1346 = vunpack.c.l.bf16 %v1197
        %v1347 = vrcp.pop %v1345
        %v1348 = vmul.f32 %v1210, %v1347
        %v1349 = vrcp.pop %v1346
        %v1350 = vmul.f32 %v1211, %v1349
        %v1351 = vpack.c.bf16 %v1348, %v1350
        %v1352 = vunpack.c.h.bf16 %v1198
        %v1353 = vunpack.c.l.bf16 %v1198
        %v1354 = vrcp.pop %v1352
        %v1355 = vmul.f32 %v1210, %v1354
        %v1356 = vrcp.pop %v1353
        %v1357 = vmul.f32 %v1211, %v1356
        %v1358 = vpack.c.bf16 %v1355, %v1357
        %v1359 = vunpack.c.h.bf16 %v1199
        %v1360 = vunpack.c.l.bf16 %v1199
        %v1361 = vrcp.pop %v1359
        %v1362 = vmul.f32 %v1210, %v1361
        %v1363 = vrcp.pop %v1360
        %v1364 = vmul.f32 %v1211, %v1363
        %v1365 = vpack.c.bf16 %v1362, %v1364
        %v1366 = vunpack.c.h.bf16 %v1200
        %v1367 = vunpack.c.l.bf16 %v1200
        %v1368 = vrcp.pop %v1366
        %v1369 = vmul.f32 %v1210, %v1368
        %v1370 = vrcp.pop %v1367
        %v1371 = vmul.f32 %v1211, %v1370
        %v1372 = vpack.c.bf16 %v1369, %v1371
        %v1373 = vunpack.c.h.bf16 %v1201
        %v1374 = vunpack.c.l.bf16 %v1201
        %v1375 = vrcp.pop %v1373
        %v1376 = vmul.f32 %v1210, %v1375
        %v1377 = vrcp.pop %v1374
        %v1378 = vmul.f32 %v1211, %v1377
        %v1379 = vpack.c.bf16 %v1376, %v1378
        %v1380 = vunpack.c.h.bf16 %v1202
        %v1381 = vunpack.c.l.bf16 %v1202
        %v1382 = vrcp.pop %v1380
        %v1383 = vmul.f32 %v1210, %v1382
        %v1384 = vrcp.pop %v1381
        %v1385 = vmul.f32 %v1211, %v1384
        %v1386 = vpack.c.bf16 %v1383, %v1385
        %v1387 = vunpack.c.h.bf16 %v1203
        %v1388 = vunpack.c.l.bf16 %v1203
        %v1389 = vrcp.pop %v1387
        %v1390 = vmul.f32 %v1210, %v1389
        %v1391 = vrcp.pop %v1388
        %v1392 = vmul.f32 %v1211, %v1391
        %v1393 = vpack.c.bf16 %v1390, %v1392
        %v1394 = vunpack.c.h.bf16 %v1204
        %v1395 = vunpack.c.l.bf16 %v1204
        %v1396 = vrcp.pop %v1394
        %v1397 = vmul.f32 %v1210, %v1396
        %v1398 = vrcp.pop %v1395
        %v1399 = vmul.f32 %v1211, %v1398
        %v1400 = vpack.c.bf16 %v1397, %v1399
        %v1401 = vunpack.c.h.bf16 %v1205
        %v1402 = vunpack.c.l.bf16 %v1205
        %v1403 = vrcp.pop %v1401
        %v1404 = vmul.f32 %v1210, %v1403
        %v1405 = vrcp.pop %v1402
        %v1406 = vmul.f32 %v1211, %v1405
        %v1407 = vpack.c.bf16 %v1404, %v1406
        %v1408 = vunpack.c.h.bf16 %v1206
        %v1409 = vunpack.c.l.bf16 %v1206
        %v1410 = vrcp.pop %v1408
        %v1411 = vmul.f32 %v1210, %v1410
        %v1412 = vrcp.pop %v1409
        %v1413 = vmul.f32 %v1211, %v1412
        %v1414 = vpack.c.bf16 %v1411, %v1413
        %v1415 = vunpack.c.h.bf16 %v1207
        %v1416 = vunpack.c.l.bf16 %v1207
        %v1417 = vrcp.pop %v1415
        %v1418 = vmul.f32 %v1210, %v1417
        %v1419 = vrcp.pop %v1416
        %v1420 = vmul.f32 %v1211, %v1419
        %v1421 = vpack.c.bf16 %v1418, %v1420
        %v1422 = vunpack.c.h.bf16 %v1208
        %v1423 = vunpack.c.l.bf16 %v1208
        %v1424 = vrcp.pop %v1422
        %v1425 = vmul.f32 %v1210, %v1424
        %v1426 = vrcp.pop %v1423
        %v1427 = vmul.f32 %v1211, %v1426
        %v1428 = vpack.c.bf16 %v1425, %v1427
        %v1429 = vunpack.c.h.bf16 %v1209
        %v1430 = vunpack.c.l.bf16 %v1209
        %v1431 = vrcp.pop %v1429
        %v1432 = vmul.f32 %v1210, %v1431
        %v1433 = vrcp.pop %v1430
        %v1434 = vmul.f32 %v1211, %v1433
        %v1435 = vpack.c.bf16 %v1432, %v1434
        %1436 = vst [vmem:[%s218] sm:$0xff] %v1218
        %1437 = vst [vmem:[%s218 + $0x8] sm:$0xff] %v1225
        %1438 = vst [vmem:[%s218 + $0x10] sm:$0xff] %v1232
        %1439 = vst [vmem:[%s218 + $0x18] sm:$0xff] %v1239
        %1440 = vst [vmem:[%s218 + $0x20] sm:$0xff] %v1246
        %1441 = vst [vmem:[%s218 + $0x28] sm:$0xff] %v1253
        %1442 = vst [vmem:[%s218 + $0x30] sm:$0xff] %v1260
        %1443 = vst [vmem:[%s218 + $0x38] sm:$0xff] %v1267
        %1444 = vst [vmem:[%s218 + $0x40] sm:$0xff] %v1274
        %1445 = vst [vmem:[%s218 + $0x48] sm:$0xff] %v1281
        %1446 = vst [vmem:[%s218 + $0x50] sm:$0xff] %v1288
        %1447 = vst [vmem:[%s218 + $0x58] sm:$0xff] %v1295
        %1448 = vst [vmem:[%s218 + $0x60] sm:$0xff] %v1302
        %1449 = vst [vmem:[%s218 + $0x68] sm:$0xff] %v1309
        %1450 = vst [vmem:[%s218 + $0x70] sm:$0xff] %v1316
        %1451 = vst [vmem:[%s218 + $0x78] sm:$0xff] %v1323
        %1452 = vst [vmem:[%s218 + $0x80] sm:$0xff] %v1330
        %1453 = vst [vmem:[%s218 + $0x88] sm:$0xff] %v1337
        %1454 = vst [vmem:[%s218 + $0x90] sm:$0xff] %v1344
        %1455 = vst [vmem:[%s218 + $0x98] sm:$0xff] %v1351
        %1456 = vst [vmem:[%s218 + $0xa0] sm:$0xff] %v1358
        %1457 = vst [vmem:[%s218 + $0xa8] sm:$0xff] %v1365
        %1458 = vst [vmem:[%s218 + $0xb0] sm:$0xff] %v1372
        %1459 = vst [vmem:[%s218 + $0xb8] sm:$0xff] %v1379
        %1460 = vst [vmem:[%s218 + $0xc0] sm:$0xff] %v1386
        %1461 = vst [vmem:[%s218 + $0xc8] sm:$0xff] %v1393
        %1462 = vst [vmem:[%s218 + $0xd0] sm:$0xff] %v1400
        %1463 = vst [vmem:[%s218 + $0xd8] sm:$0xff] %v1407
        %1464 = vst [vmem:[%s218 + $0xe0] sm:$0xff] %v1414
        %1465 = vst [vmem:[%s218 + $0xe8] sm:$0xff] %v1421
        %1466 = vst [vmem:[%s218 + $0xf0] sm:$0xff] %v1428
        %1467 = vst [vmem:[%s218 + $0xf8] sm:$0xff] %v1435
        %s1468 = sand.u32 %s137, 1
        %s1469 = scalar_lea.sflag [#allocation3], %s1468
        %s1470 = sand.u32 %s137, 1
        %s1471 = smul.addr %s1470, 256
        %s1472 = scalar_lea.vmem [#allocation2], %s1471
        // Predicated region
        $region41: #{tpu_custom_call.1} parent=39 // pred_check
          %p1473 = pneg %p147
        $region42: #{tpu_custom_call.1} parent=39 // pred_check_branch
          %1475 = sbr.rel (%p1473) target = $region44
        $region43: #{tpu_custom_call.1} parent=39 // pred_region
          %s1476 = smul.u32 32, %s19
          %1478 = vsyncadd %s1469, 0
          %s1479 = smul.addr %s1476, 2
          %s1480 = smul.addr %s1479, 4
          %s1481 = scalar_lea.hbm %s5, %s1480
          %s1482 = sshll.u32 %s1472, 4
          %s1483 = int_to_ptr.vmem [resolvable:$true] %s1482
          %s1484 = sshll.u32 %s1481, 4
          %s1485 = int_to_ptr.hbm [resolvable:$true] %s1484
          %1490 = dma.vmem_to_hbm [thread:$0]  %s1483, 4096, %s1485, %s1469, 128, 128, 8
        $region44: #{tpu_custom_call.1} parent=39 // pred_fallthru
          _
      $region40: #{tpu_custom_call.1} parent=5 // pred_fallthru
        _
      %p1491 = scmp.le.s32.totalorder 2, %s14
      // Predicated region
      $region45: #{tpu_custom_call.1} parent=5 // pred_check
        %p1492 = pneg %p1491
      $region46: #{tpu_custom_call.1} parent=5 // pred_check_branch
        %1494 = sbr.rel (%p1492) target = $region48
      $region47: #{tpu_custom_call.1} parent=5 // pred_region
        %s1495 = ssub.s32 %s14, 2
        // Predicated region
        $region49: #{tpu_custom_call.1} parent=47 // pred_check
          %p1496 = pneg %p153
        $region50: #{tpu_custom_call.1} parent=47 // pred_check_branch
          %1498 = sbr.rel (%p1496) target = $region52
        $region51: #{tpu_custom_call.1} parent=47 // pred_region
          %s1499 = sand.u32 %s138, 1
          %s1500 = scalar_lea.sflag [#allocation3], %s1499
          %s1501 = sand.u32 %s138, 1
          %s1502 = smul.addr %s1501, 256
          %s1503 = scalar_lea.vmem [#allocation2], %s1502
          %1505 = dma.done %s1500, 4096
        $region52: #{tpu_custom_call.1} parent=47 // pred_fallthru
          _
      $region48: #{tpu_custom_call.1} parent=5 // pred_fallthru
        _
    $region6: #{tpu_custom_call.1} parent=1 // loop_footer
      %s18 = sadd.s32 1, %s14
    $region7: #{tpu_custom_call.1} parent=1 // loop_footer_branch
      %13 = sbr.rel target = $region3
    $region8: #{tpu_custom_call.1} parent=1 // loop_exit
      _
    %1506 = vsyncpa [#allocation3], 1
    %s1507 = scalar_lea.sflag [#allocation3], 1
    %1508 = vsyncpa %s1507, 1

</llo_original>
